<compile_context>
chip_gen: v7x
topology: tpu7x:2x2x1
jax: 0.10.0
libtpu: 0.0.40
codegen_flags: <defaults>
</compile_context>

<pallas_src>
import functools
import math

import jax
import jax.numpy as jnp
from jax import lax
from jax.experimental import pallas as pl
from jax.experimental.pallas import tpu as pltpu


def _round_up(x: int, m: int) -> int:
    return (x + m - 1) // m * m


# --------------------------------------------------------------------------
# RMSNorm
# --------------------------------------------------------------------------
def _rmsnorm_kernel(x_ref, w_ref, o_ref, *, eps):
    x = x_ref[...].astype(jnp.float32)
    ms = jnp.mean(x * x, axis=-1, keepdims=True)
    o_ref[...] = (x * lax.rsqrt(ms + eps) * w_ref[...]).astype(o_ref.dtype)


def rmsnorm(x, w, *, eps: float = 1e-6, tm: int = 256):
    """x: (..., D) -> w * x * rsqrt(mean(x^2) + eps), f32."""
    lead = x.shape[:-1]
    d = x.shape[-1]
    xf = x.reshape(-1, d).astype(jnp.float32)
    n = xf.shape[0]
    tm = max(8, min(_round_up(tm, 8), _round_up(n, 8)))
    n_pad = _round_up(n, tm)
    if n_pad != n:
        xf = jnp.pad(xf, ((0, n_pad - n), (0, 0)))
    wf = w.reshape(1, d).astype(jnp.float32)

    out = pl.pallas_call(
        functools.partial(_rmsnorm_kernel, eps=eps),
        out_shape=jax.ShapeDtypeStruct((n_pad, d), jnp.float32),
        grid_spec=pltpu.PrefetchScalarGridSpec(
            num_scalar_prefetch=0,
            grid=(n_pad // tm,),
            in_specs=[
                pl.BlockSpec((tm, d), lambda i: (i, 0)),
                pl.BlockSpec((1, d), lambda i: (0, 0)),
            ],
            out_specs=pl.BlockSpec((tm, d), lambda i: (i, 0)),
        ),
        compiler_params=pltpu.CompilerParams(dimension_semantics=("parallel",)),
    )(xf, wf)
    return out[:n].reshape(*lead, d)


# --------------------------------------------------------------------------
# NoisyTopKRouter
# --------------------------------------------------------------------------
def _router_kernel(xt_ref, wf_ref, bf_ref, noise_ref, r_out_ref, idx_ref):
    """One token tile, transposed (experts-on-sublanes, tokens-on-lanes) layout.

    xt_ref:    (n_embd, TM)   bf16   x^T tile (tokens on lanes)
    wf_ref:    (2E, n_embd)   bf16   fused [W_route ; W_noise]
    bf_ref:    (2E, 1)        f32    fused [b_route ; b_noise]
    noise_ref: (E, TM)        f32    standard-normal draw (randn_like)
    r_out_ref: (E, TM)        f32    router probabilities
    idx_ref:   (top_k, TM)    i32    top-k expert indices (desc by noisy logit)
    """
    n_experts = r_out_ref.shape[0]
    top_k = idx_ref.shape[0]

    # Fused projection on the MXU: one matmul serves both heads (f32 accum).
    logits = jnp.dot(wf_ref[...], xt_ref[...],
                     preferred_element_type=jnp.float32)           # (2E, TM)
    logits = logits + bf_ref[...]                                  # lane broadcast

    r_act = logits[:n_experts, :]                                  # (E, TM)
    h = logits[n_experts:, :]                                      # (E, TM)

    # softplus in f32 (matches torch.nn.functional.softplus, threshold=20).
    sp = jnp.where(h > 20.0, h, jnp.log1p(jnp.exp(jnp.minimum(h, 20.0))))
    noisy = r_act + noise_ref[...] * sp                            # (E, TM)

    expert_iota = lax.broadcasted_iota(jnp.int32, noisy.shape, 0)

    # Iterative top-k over the small static expert (sublane) axis, with an
    # incremental softmax: the first max is the global row max m0, so
    #   prob_k = exp(v_k - m0) / sum_j exp(v_j - m0).
    work = noisy
    dense_e = jnp.zeros_like(noisy)
    denom = jnp.zeros((1, noisy.shape[1]), jnp.float32)
    m0 = None
    for k in range(top_k):
        m = jnp.max(work, axis=0, keepdims=True)                   # (1, TM)
        # first (lowest-index) argmax -> same tie-break as lax.top_k / torch.topk
        k_idx = jnp.min(
            jnp.where(work == m, expert_iota, jnp.int32(n_experts)),
            axis=0, keepdims=True)                                 # (1, TM)
        if k == 0:
            m0 = m
        e = jnp.exp(m - m0)                                        # (1, TM)
        denom = denom + e
        dense_e = jnp.where(expert_iota == k_idx, e, dense_e)
        idx_ref[pl.ds(k, 1), :] = k_idx                            # lane-dense row store
        work = jnp.where(expert_iota == k_idx, -jnp.inf, work)

    r_out_ref[...] = (dense_e * pl.reciprocal(denom, approx=False)
                      ).astype(r_out_ref.dtype)


def noisy_topk_router(x, w_route, b_route, w_noise, b_noise, noise,
                      *, top_k: int, tm: int = 512):
    """x: (..., n_embd). Returns (r_out (..., n_experts), idx (..., top_k))."""
    lead_shape = x.shape[:-1]
    n_embd = x.shape[-1]
    n_experts = w_route.shape[1]
    assert top_k <= n_experts, "top_k must not exceed the number of experts"

    xf = x.reshape(-1, n_embd)
    noisef = noise.reshape(-1, n_experts)
    n_tok = xf.shape[0]

    # Lane-aligned token tile; pad the token axis instead of asserting
    # divisibility (padded columns are sliced off after the kernel).
    tm = max(128, min(_round_up(tm, 128), _round_up(n_tok, 128)))
    n_pad = _round_up(n_tok, tm)
    if n_pad != n_tok:
        xf = jnp.pad(xf, ((0, n_pad - n_tok), (0, 0)))
        noisef = jnp.pad(noisef, ((0, n_pad - n_tok), (0, 0)))

    # Transposed, lane-dense layout; bf16 matmul operands (f32 accumulation).
    xt = xf.T.astype(jnp.bfloat16)                      # (n_embd, Np)
    noise_t = noisef.T.astype(jnp.float32)              # (E, Np)
    wf = jnp.concatenate([w_route.T, w_noise.T], axis=0).astype(jnp.bfloat16)
    bf = jnp.concatenate([jnp.reshape(b_route, (-1,)),
                          jnp.reshape(b_noise, (-1,))], axis=0)
    bf = bf.reshape(2 * n_experts, 1).astype(jnp.float32)

    grid = (n_pad // tm,)

    # VMEM budget: double-buffered per-step tiles + grid-invariant weights.
    per_step = (n_embd * tm * 2                      # x^T tile (bf16)
                + n_experts * tm * 4                 # noise tile (f32)
                + 2 * n_experts * n_embd * 2         # fused weights (bf16)
                + 2 * n_experts * 4                  # fused bias
                + n_experts * tm * 4                 # probs out
                + top_k * tm * 4)                    # idx out
    vmem_limit = int(min(max(3 * per_step + (1 << 20), 16 << 20), 64 << 20))

    cost = pl.CostEstimate(
        flops=2 * n_pad * n_embd * (2 * n_experts),
        transcendentals=3 * n_pad * n_experts,
        bytes_accessed=(xt.size * 2 + noise_t.size * 4 + wf.size * 2
                        + bf.size * 4 + n_experts * n_pad * 4
                        + top_k * n_pad * 4),
    )

    r_out_t, idx_t = pl.pallas_call(
        _router_kernel,
        out_shape=(
            jax.ShapeDtypeStruct((n_experts, n_pad), jnp.float32),
            jax.ShapeDtypeStruct((top_k, n_pad), jnp.int32),
        ),
        grid_spec=pltpu.PrefetchScalarGridSpec(
            num_scalar_prefetch=0,
            grid=grid,
            in_specs=[
                pl.BlockSpec((n_embd, tm), lambda i: (0, i)),             # x^T tile
                pl.BlockSpec((2 * n_experts, n_embd), lambda i: (0, 0)),  # [Wr;Wn]
                pl.BlockSpec((2 * n_experts, 1), lambda i: (0, 0)),       # [br;bn]
                pl.BlockSpec((n_experts, tm), lambda i: (0, i)),          # noise^T
            ],
            out_specs=[
                pl.BlockSpec((n_experts, tm), lambda i: (0, i)),          # probs^T
                pl.BlockSpec((top_k, tm), lambda i: (0, i)),              # idx^T
            ],
        ),
        compiler_params=pltpu.CompilerParams(
            dimension_semantics=("parallel",),
            vmem_limit_bytes=vmem_limit),
        cost_estimate=cost,
    )(xt, wf, bf, noise_t)

    # Layout plumbing back to the PyTorch-facing (..., E) / (..., K) shapes.
    r_out = r_out_t.T[:n_tok].reshape(*lead_shape, n_experts)
    idx = idx_t.T[:n_tok].reshape(*lead_shape, top_k)   # NOTE: int32 (torch: int64)
    return r_out, idx


# --------------------------------------------------------------------------
# DeepSeekMoE expert compute (routed + shared experts, gate-weighted)
# --------------------------------------------------------------------------
def _moe_expert_kernel(x_ref, g_ref, w1_ref, b1_ref, w2_ref, b2_ref,
                       o_ref, acc_ref):
    """grid = (token_tiles, n_experts_total).  Accumulates xn + sum_e g_e * MLP_e(xn)."""
    e = pl.program_id(1)

    @pl.when(e == 0)
    def _():
        # DeepSeekMoE returns x + f_out (x here is the normalized input).
        acc_ref[...] = x_ref[...].astype(jnp.float32)

    xb = x_ref[...].astype(jnp.bfloat16)
    h = jnp.dot(xb, w1_ref[0], preferred_element_type=jnp.float32) + b1_ref[0]
    h = jnp.maximum(h, 0.0)                                        # ReLU
    # TODO(synk): Expert's nn.Dropout(0.5) is identity in eval mode; not modeled.
    y = jnp.dot(h.astype(jnp.bfloat16), w2_ref[0],
                preferred_element_type=jnp.float32) + b2_ref[0]    # (TM, D)

    # Per-token gate for expert e: masked lane reduce of the (TM, E_total) tile.
    lane = lax.broadcasted_iota(jnp.int32, g_ref.shape, 1)
    g = jnp.sum(jnp.where(lane == e, g_ref[...], 0.0),
                axis=1, keepdims=True)                             # (TM, 1)
    acc_ref[...] += g * y

    @pl.when(e == pl.num_programs(1) - 1)
    def _():
        o_ref[...] = acc_ref[...].astype(o_ref.dtype)


def moe_experts(xn, gates, w1, b1, w2, b2, *, tm: int = 256):
    """xn: (N, D) normalized tokens.  gates: (N, E_total) -- router probs for the
    routed experts (exactly 0 for non-selected) and 1.0 for shared experts.
    w1: (E_total, D, H), b1: (E_total, H), w2: (E_total, H, D), b2: (E_total, D).
    Returns xn + f_out, i.e. DeepSeekMoE's output given the normalized input."""
    n, d = xn.shape
    e_total, _, hdim = w1.shape

    tm = max(8, min(_round_up(tm, 8), _round_up(n, 8)))
    n_pad = _round_up(n, tm)
    xf = xn.astype(jnp.float32)
    gf = gates.astype(jnp.float32)
    if n_pad != n:
        xf = jnp.pad(xf, ((0, n_pad - n), (0, 0)))
        gf = jnp.pad(gf, ((0, n_pad - n), (0, 0)))

    w1b = w1.astype(jnp.bfloat16)
    w2b = w2.astype(jnp.bfloat16)
    b1f = b1.reshape(e_total, 1, hdim).astype(jnp.float32)
    b2f = b2.reshape(e_total, 1, d).astype(jnp.float32)

    out = pl.pallas_call(
        _moe_expert_kernel,
        out_shape=jax.ShapeDtypeStruct((n_pad, d), jnp.float32),
        grid_spec=pltpu.PrefetchScalarGridSpec(
            num_scalar_prefetch=0,
            grid=(n_pad // tm, e_total),
            in_specs=[
                pl.BlockSpec((tm, d), lambda i, e: (i, 0)),          # xn tile
                pl.BlockSpec((tm, e_total), lambda i, e: (i, 0)),    # gates tile
                pl.BlockSpec((1, d, hdim), lambda i, e: (e, 0, 0)),  # W1[e]
                pl.BlockSpec((1, 1, hdim), lambda i, e: (e, 0, 0)),  # b1[e]
                pl.BlockSpec((1, hdim, d), lambda i, e: (e, 0, 0)),  # W2[e]
                pl.BlockSpec((1, 1, d), lambda i, e: (e, 0, 0)),     # b2[e]
            ],
            out_specs=pl.BlockSpec((tm, d), lambda i, e: (i, 0)),
            scratch_shapes=[pltpu.VMEM((tm, d), jnp.float32)],
        ),
        compiler_params=pltpu.CompilerParams(
            dimension_semantics=("parallel", "arbitrary")),
    )(xf, gf, w1b, b1f, w2b, b2f)
    return out[:n]


# --------------------------------------------------------------------------
# Demo + correctness checks
# --------------------------------------------------------------------------
if __name__ == "__main__":
    batch, seq, n_embd = 2, 8, 32
    n_r_experts, n_s_experts, top_k = 8, 2, 2
    hidden = 4 * n_embd
    e_total = n_r_experts + n_s_experts
    n_tok = batch * seq

    key = jax.random.PRNGKey(0)
    (kx, kwr, kbr, kwn, kbn, knz, kw1, kb1, kw2, kb2) = jax.random.split(key, 10)

    x = jax.random.normal(kx, (batch, seq, n_embd), dtype=jnp.float32)

    # RMSNorm weight (nn.Parameter(torch.ones(n_embd))).
    w_rms2 = jnp.ones((n_embd,), jnp.float32)

    # Router params (nn.Linear-style uniform bound 1/sqrt(fan_in)).
    bound = 1.0 / math.sqrt(n_embd)
    w_route = jax.random.uniform(kwr, (n_embd, n_r_experts), jnp.float32, -bound, bound)
    b_route = jax.random.uniform(kbr, (1, n_r_experts), jnp.float32, -bound, bound)
    w_noise = jax.random.uniform(kwn, (n_embd, n_r_experts), jnp.float32, -bound, bound)
    b_noise = jax.random.uniform(kbn, (1, n_r_experts), jnp.float32, -bound, bound)
    # torch.randn_like(r_act) equivalent, drawn deterministically outside the kernel.
    noise = jax.random.normal(knz, (batch, seq, n_r_experts), dtype=jnp.float32)

    # Expert params: routed experts first, then shared experts.
    b1_bound = 1.0 / math.sqrt(n_embd)
    b2_bound = 1.0 / math.sqrt(hidden)
    w1_stack = jax.random.uniform(kw1, (e_total, n_embd, hidden), jnp.float32,
                                  -b1_bound, b1_bound)
    b1_stack = jax.random.uniform(kb1, (e_total, hidden), jnp.float32,
                                  -b1_bound, b1_bound)
    w2_stack = jax.random.uniform(kw2, (e_total, hidden, n_embd), jnp.float32,
                                  -b2_bound, b2_bound)
    b2_stack = jax.random.uniform(kb2, (e_total, n_embd), jnp.float32,
                                  -b2_bound, b2_bound)

    # ---- Block forward (MoE branch): x + DeepSeekMoE(RMSNorm(x)) ----
    # TODO(synk): the MLA-attention residual branch is skipped (reference
    # forward is not executable as written).
    xn = rmsnorm(x, w_rms2)                                         # (B, S, D)
    r_out, idx = noisy_topk_router(xn, w_route, b_route, w_noise, b_noise,
                                   noise, top_k=top_k)
    xn_flat = xn.reshape(-1, n_embd)
    gates_full = jnp.concatenate(
        [r_out.reshape(-1, n_r_experts),
         jnp.ones((n_tok, n_s_experts), jnp.float32)], axis=-1)     # (N, E_total)
    moe_out = moe_experts(xn_flat, gates_full,
                          w1_stack, b1_stack, w2_stack, b2_stack)   # (N, D)
    block_out = x + moe_out.reshape(batch, seq, n_embd)
    jax.block_until_ready((xn, r_out, idx, moe_out, block_out))

    # ---- Pure-JAX references (same bf16 matmul / f32 accumulation policy) ----
    def rms_ref(x, w, eps=1e-6):
        xf = x.astype(jnp.float32)
        ms = jnp.mean(xf * xf, axis=-1, keepdims=True)
        return w * xf * lax.rsqrt(ms + eps)

    def router_ref(xv):
        xb = xv.astype(jnp.bfloat16)
        r_act = jnp.dot(xb, w_route.astype(jnp.bfloat16),
                        preferred_element_type=jnp.float32) + b_route[0]
        h = jnp.dot(xb, w_noise.astype(jnp.bfloat16),
                    preferred_element_type=jnp.float32) + b_noise[0]
        sp = jnp.where(h > 20.0, h, jnp.log1p(jnp.exp(jnp.minimum(h, 20.0))))
        noisy = r_act + noise * sp
        _, ids = lax.top_k(noisy, top_k)
        hot = jax.nn.one_hot(ids, n_r_experts, dtype=jnp.bool_).any(axis=-2)
        dense = jnp.where(hot, noisy, -jnp.inf)
        return jax.nn.softmax(dense, axis=-1), ids

    def experts_ref(xv, gates):
        xb = xv.astype(jnp.bfloat16)
        f = xv.astype(jnp.float32)
        for e in range(gates.shape[-1]):
            h = jnp.maximum(
                jnp.dot(xb, w1_stack[e].astype(jnp.bfloat16),
                        preferred_element_type=jnp.float32) + b1_stack[e], 0.0)
            y = jnp.dot(h.astype(jnp.bfloat16), w2_stack[e].astype(jnp.bfloat16),
                        preferred_element_type=jnp.float32) + b2_stack[e]
            f = f + gates[:, e:e + 1] * y
        return f

    xn_ref = rms_ref(x, w_rms2)
    assert jnp.allclose(xn, xn_ref, atol=1e-5), "rmsnorm mismatch"

    r_ref, idx_r = router_ref(xn)            # fed the kernel rmsnorm output
    assert r_out.shape == r_ref.shape and idx.shape == idx_r.shape
    assert jnp.allclose(r_out, r_ref, atol=3e-5), "router probs mismatch"
    assert jnp.array_equal(idx, idx_r.astype(jnp.int32)), "topk indices mismatch"

    moe_ref_out = experts_ref(xn_flat, gates_full)
    assert jnp.allclose(moe_out, moe_ref_out, atol=2e-2, rtol=1e-3), \
        "moe expert output mismatch"

    print("KERNEL_OK")
</pallas_src>

<mosaic_0001>
module attributes {stable_mosaic.version = 11 : i64} {
  func.func @_rmsnorm_kernel(%arg0: i32, %arg1: memref<16x32xf32, #tpu.memory_space<vmem>>, %arg2: memref<1x32xf32, #tpu.memory_space<vmem>>, %arg3: memref<16x32xf32, #tpu.memory_space<vmem>>) attributes {dimension_semantics = [#tpu.dimension_semantics<parallel>], iteration_bounds = array<i64: 1>, scalar_prefetch = 0 : i64, scratch_operands = 0 : i64, tpu.core_type = #tpu.core_type<tc>, window_params = [{transform_indices = @transform_0, window_bounds = array<i64: 16, 32>}, {pipeline_mode = #tpu.pipeline_mode<synchronous>, transform_indices = @transform_1, window_bounds = array<i64: 1, 32>}, {transform_indices = @transform_2, window_bounds = array<i64: 16, 32>}]} {
    %c0 = arith.constant 0 : index
    %c0_0 = arith.constant 0 : index
    %0 = vector.load %arg1[%c0, %c0_0] : memref<16x32xf32, #tpu.memory_space<vmem>>, vector<16x32xf32>
    %1 = arith.mulf %0, %0 : vector<16x32xf32>
    %cst = arith.constant dense<0.000000e+00> : vector<16xf32>
    %2 = vector.multi_reduction <add>, %1, %cst [1] : vector<16x32xf32> to vector<16xf32>
    %3 = vector.shape_cast %2 : vector<16xf32> to vector<16x1xf32>
    %cst_1 = arith.constant 3.200000e+01 : f32
    %4 = vector.broadcast %cst_1 : f32 to vector<16x1xf32>
    %5 = arith.divf %3, %4 : vector<16x1xf32>
    %cst_2 = arith.constant 9.99999997E-7 : f32
    %6 = vector.broadcast %cst_2 : f32 to vector<16x1xf32>
    %7 = arith.addf %5, %6 : vector<16x1xf32>
    %8 = math.rsqrt %7 : vector<16x1xf32>
    %9 = vector.broadcast %8 : vector<16x1xf32> to vector<16x32xf32>
    %10 = arith.mulf %0, %9 : vector<16x32xf32>
    %c0_3 = arith.constant 0 : index
    %c0_4 = arith.constant 0 : index
    %11 = vector.load %arg2[%c0_3, %c0_4] : memref<1x32xf32, #tpu.memory_space<vmem>>, vector<1x32xf32>
    %12 = vector.broadcast %11 : vector<1x32xf32> to vector<16x32xf32>
    %13 = arith.mulf %10, %12 : vector<16x32xf32>
    %c0_5 = arith.constant 0 : index
    %c0_6 = arith.constant 0 : index
    %14 = vector.load %arg3[%c0_5, %c0_6] : memref<16x32xf32, #tpu.memory_space<vmem>>, vector<16x32xf32>
    tpu.vector_store %arg3[%c0_5, %c0_6], %13 {strides = array<i32>} : memref<16x32xf32, #tpu.memory_space<vmem>>, vector<16x32xf32>,
    return
  }
  func.func @transform_0(%arg0: i32) -> (i32, i32) {
    %c0_i32 = arith.constant 0 : i32
    %c0_i32_0 = arith.constant 0 : i32
    return %arg0, %c0_i32 : i32, i32
  }
  func.func @transform_1(%arg0: i32) -> (i32, i32) {
    %c0_i32 = arith.constant 0 : i32
    %c0_i32_0 = arith.constant 0 : i32
    %c0_i32_1 = arith.constant 0 : i32
    return %c0_i32, %c0_i32_0 : i32, i32
  }
  func.func @transform_2(%arg0: i32) -> (i32, i32) {
    %c0_i32 = arith.constant 0 : i32
    %c0_i32_0 = arith.constant 0 : i32
    return %arg0, %c0_i32 : i32, i32
  }
}

</mosaic_0001>

<llo_original>
// kernel: tpu_custom_call.1
$region0: #{tpu_custom_call.1}
  #allocation0 [shape = 'u32[]', space=smem, size = 0x4, offset = 0x4, fixed_abs, tag = 'smem constant byte address 0x4 - core index']
  #allocation1 [shape = 'u32[144,128]{1,0:T(1,128)}', space=vmem, size = 0x12000, scoped, tag = 'internal scratch']
  %s0 = inlined_call_operand.hbm [shape: f32[16,32], index: 0, kind: input, shape index: {}]
  %s1 = inlined_call_operand.vmem [shape: f32[1,32], index: 1, kind: input, shape index: {}]
  %s2 = inlined_call_operand.hbm [shape: f32[16,32], index: 2, kind: output, shape index: {}]
  %s3 = sld [smem:[#allocation0]]
  $region22: #{tpu_custom_call.1} parent=0
    _
  %s5 = ssub.s32 1, %s3
  %s6 = scalar_select 0, %s5, %s3
  $region1: #{tpu_custom_call.1} parent=0
    #allocation2 [shape = 'u8[8192]{0}', space=vmem, size = 0x2000, scoped, tag = 'input window, operand 0, single buffered']
    #allocation3 [shape = 's32[1]{0}', space=sflag, size = 0x4, scoped, tag = 'scoped memory for tpu_custom_call.1']
    #allocation4 [shape = 's32[1]{0}', space=sflag, size = 0x4, scoped, tag = 'scoped memory for tpu_custom_call.1']
    #allocation5 [shape = 'u8[8192]{0}', space=vmem, size = 0x2000, scoped, tag = 'output window, operand 0, single buffered']
    %7 = vsyncpa [#allocation3], 0
    %8 = vsyncpa [#allocation4], 0
    // Predicated region
    $region2: #{tpu_custom_call.1} parent=1 // pred_check
      _
    $region3: #{tpu_custom_call.1} parent=1 // pred_check_branch
      %10 = sbr.rel (0) target = $region5
    $region4: #{tpu_custom_call.1} parent=1 // pred_region
      %s12 = ssub.s32 256, 256
      %13 = vsyncadd [#allocation3], %s12
      %s14 = sshll.u32 [#allocation2], 4
      %s15 = int_to_ptr.vmem [resolvable:$true] %s14
      %20 = dma.hbm_to_vmem [thread:$0]  %s0, 256, %s15, [#allocation3], 128, 128, 8
    $region5: #{tpu_custom_call.1} parent=1 // pred_fallthru
      _
    // Predicated region
    $region6: #{tpu_custom_call.1} parent=1 // pred_check
      _
    $region7: #{tpu_custom_call.1} parent=1 // pred_check_branch
      %22 = sbr.rel (0) target = $region9
    $region8: #{tpu_custom_call.1} parent=1 // pred_region
      _
    $region9: #{tpu_custom_call.1} parent=1 // pred_fallthru
      _
    // Predicated region
    $region10: #{tpu_custom_call.1} parent=1 // pred_check
      _
    $region11: #{tpu_custom_call.1} parent=1 // pred_check_branch
      %24 = sbr.rel (0) target = $region13
    $region12: #{tpu_custom_call.1} parent=1 // pred_region
      %25 = dma.done [#allocation3], 256
    $region13: #{tpu_custom_call.1} parent=1 // pred_fallthru
      _
    %v26 = vld [vmem:[#allocation2] sm:$0xff]
    %v27 = vld [vmem:[#allocation2 + $0x8] sm:$0xff]
    %v28 = vmul.f32 %v26, %v26
    %v29 = vmul.f32 %v27, %v27
    %vm30 = vcmask 261120
    %v31 = vsel %vm30, %v28, 0.0
    %32 = vadd.xlane.f32.xlu0 %v31
    %v33 = vpop.xlane.xlu0 %32
    %v34 = vsel %vm30, %v29, 0.0
    %35 = vadd.xlane.f32.xlu0 %v34
    %v36 = vpop.xlane.xlu0 %35
    %v37 = vrcp.pop 32.0
    %v38 = vmul.f32 %v33, %v37
    %v39 = vmul.f32 %v36, %v37
    %v40 = vadd.f32 %v38, 1e-06
    %v41 = vadd.f32 %v39, 1e-06
    %v42 = vrsqrt.pop %v40
    %v43 = vrsqrt.pop %v41
    %v44 = vmul.f32 %v26, %v42
    %v45 = vmul.f32 %v27, %v43
    %v46 = vld [vmem:[%s1] sm:$0x1]
    %v48 = vlaneseq
    %v49 = vshrl.u32 %v48, 7
    %v50 = vsub.s32 0, %v49
    %v51 = vrot.slane %v46, %v50
    %v53 = vmul.f32 %v44, %v51
    %v54 = vmul.f32 %v45, %v51
    %55 = vst.msk [vmem:[#allocation5] sm:$0xff] %vm30, %v53
    %56 = vst.msk [vmem:[#allocation5 + $0x8] sm:$0xff] %vm30, %v54
    // Predicated region
    $region14: #{tpu_custom_call.1} parent=1 // pred_check
      _
    $region15: #{tpu_custom_call.1} parent=1 // pred_check_branch
      %58 = sbr.rel (0) target = $region17
    $region16: #{tpu_custom_call.1} parent=1 // pred_region
      %s60 = ssub.s32 256, 256
      %61 = vsyncadd [#allocation4], %s60
      %s62 = sshll.u32 [#allocation5], 4
      %s63 = int_to_ptr.vmem [resolvable:$true] %s62
      %68 = dma.vmem_to_hbm [thread:$0]  %s63, 256, %s2, [#allocation4], 128, 128, 8
    $region17: #{tpu_custom_call.1} parent=1 // pred_fallthru
      _
    // Predicated region
    $region18: #{tpu_custom_call.1} parent=1 // pred_check
      _
    $region19: #{tpu_custom_call.1} parent=1 // pred_check_branch
      %70 = sbr.rel (0) target = $region21
    $region20: #{tpu_custom_call.1} parent=1 // pred_region
      %71 = dma.done [#allocation4], 256
    $region21: #{tpu_custom_call.1} parent=1 // pred_fallthru
      _
    %72 = vsyncpa [#allocation3], 1
    %73 = vsyncpa [#allocation4], 1

</llo_original>
